<compile_context>
chip_gen: v7x
topology: tpu7x:2x2x1
jax: 0.10.0
libtpu: 0.0.40
codegen_flags: <defaults>
</compile_context>

<pallas_src>
from functools import partial

import jax
import jax.numpy as jnp
from jax import lax
from jax.experimental import pallas as pl
from jax.experimental.pallas import tpu as pltpu


def _graph_embed_kernel(wgt_ref, adjbd_ref, params_ref, q_ref, emb_ref, *,
                        iters, tile_graphs, graphsize, embedsize):
    TB, G, E = tile_graphs, graphsize, embedsize
    TBG = TB * G

    # Packed, batch-independent parameters (built once in the wrapper).
    vecs = params_ref[E:E + 8, :]       # (8, E) sublane-aligned load; rows 0..4 used
    wpos = vecs[0:1, :]                 # (1, E) relu( wew)^T @ wnbw^T
    wneg = vecs[1:2, :]                 # (1, E) relu(-wew)^T @ wnbw^T
    v_all = vecs[2:3, :]                # (1, E) wqall^T @ wreduc[0, :E]
    v_act = vecs[3:4, :]                # (1, E) wqact^T @ wreduc[0, E:]
    wsel = vecs[4:5, :]                 # (1, E) w_selected[:, 0]

    # (TBG, G+1): lanes 0..G-1 = weights^T rows, lane G = feature column.
    wcols = wgt_ref[...]
    wT = wcols[:, 0:G]                  # wT[(b,j), i] = weights[b, i, j]
    f_col = wcols[:, G:G + 1]           # features[(b, j)]

    vsel = f_col * wsel                 # (TBG, E) v_selected (VPU outer product)

    # v_weights via relu(a*b) = relu(a)relu(b) + relu(-a)relu(-b): lane-reduce
    # the neighbour index, then two cheap (rows,1)x(1,E) VPU outer products.
    pos = jnp.sum(jnp.maximum(wT, 0.0), axis=1, keepdims=True)     # (TBG, 1)
    neg = jnp.sum(jnp.maximum(-wT, 0.0), axis=1, keepdims=True)    # (TBG, 1)
    base = vsel + pos * wpos + neg * wneg                          # (TBG, E)

    # Propagation; iteration 0 hoisted (emb starts at zeros -> emb = relu(base)).
    if iters <= 0:
        emb = jnp.zeros_like(base)
    else:
        def body(_, emb):
            adj = adjbd_ref[0]                         # (TBG, TBG) block-diag
            wnbp_t = params_ref[0:E, :]                # (E, E)   w_nbpriors^T
            vp = jnp.dot(adj, emb, preferred_element_type=jnp.float32)
            vp = jnp.dot(vp, wnbp_t, preferred_element_type=jnp.float32)
            return jnp.maximum(base + vp, 0.0)

        emb = lax.fori_loop(0, iters - 1, body, jnp.maximum(base, 0.0))

    emb_ref[...] = emb

    # q head (strength-reduced):
    #   q[row] = (sum over graph rows of emb) . v_all + emb[row] . v_act
    emb3 = emb.reshape(TB, G, E)                                   # layout-preserving
    sum_g = jnp.sum(emb3, axis=1, keepdims=True)                   # (TB, 1, E)
    t_act = jnp.sum(emb3 * v_act.reshape(1, 1, E), axis=2, keepdims=True)   # (TB, G, 1)
    t_all = jnp.sum(sum_g * v_all.reshape(1, 1, E), axis=2, keepdims=True)  # (TB, 1, 1)
    q_ref[...] = (t_act + t_all).reshape(TBG, 1)


def _ceil_div(a, b):
    return -(-a // b)


@partial(jax.jit, static_argnames=("iters", "tile_graphs"))
def graph_embedder_forward(features, weights, adjacency, params, iters=5,
                           tile_graphs=None):
    """features (B,G), weights (B,G,G), adjacency (B,G,G) -> (q (B,G), emb (B,G,E))."""
    wsel, wew, wnbw, wnbp, wqall, wqact, wreduc = params   # torch layout (out, in)
    B, G = features.shape
    E = wsel.shape[0]

    # TB graphs per grid step.  Default: two padding-free tiles (both v7x TCs
    # get one; on single-TC v5e/v6e the second "parallel" step is ~0.35 us of
    # overhead).  TB is rounded up so TB*G is sublane (8) aligned.
    if tile_graphs is not None:
        TB = int(tile_graphs)
    else:
        TB = _ceil_div(B, 2) if B >= 2 else 1
    while (TB * G) % 8 != 0:
        TB += 1
    num_tiles = _ceil_div(B, TB)
    B_pad = num_tiles * TB
    TBG = TB * G
    assert (TBG % 8) == 0

    f = features.astype(jnp.float32)
    w = weights.astype(jnp.float32)
    a = adjacency.astype(jnp.float32)
    pad = B_pad - B
    if pad:
        # Padded graphs have zero features/weights/adjacency -> emb = 0, q = 0;
        # the block-diagonal packing keeps them isolated from real graphs.
        f = jnp.pad(f, ((0, pad), (0, 0)))
        w = jnp.pad(w, ((0, pad), (0, 0), (0, 0)))
        a = jnp.pad(a, ((0, pad), (0, 0), (0, 0)))

    # ---- batch-independent parameter folding (trace time under jit, exact f32) ----
    wsel_row = wsel[:, 0].astype(jnp.float32)                                # (E,)
    wpos = jnp.sum(wnbw * jnp.maximum(wew[:, 0], 0.0)[None, :], axis=1)      # (E,)
    wneg = jnp.sum(wnbw * jnp.maximum(-wew[:, 0], 0.0)[None, :], axis=1)     # (E,)
    v_all = jnp.sum(wqall * wreduc[0, :E][:, None], axis=0)                  # (E,)
    v_act = jnp.sum(wqact * wreduc[0, E:][:, None], axis=0)                  # (E,)
    packed = jnp.concatenate(
        [wnbp.T.astype(jnp.float32),
         jnp.stack([wpos, wneg, v_all, v_act, wsel_row], axis=0),
         jnp.zeros((3, E), jnp.float32)], axis=0).astype(jnp.float32)        # (E+8, E)

    # ---- per-batch data prep (fuses with the pallas_call under jit) ----
    # Transposed edge weights with the feature column appended as lane G.
    wgt_t = jnp.swapaxes(w, 1, 2).reshape(B_pad * G, G)
    wgt_aug = jnp.concatenate([wgt_t, f.reshape(B_pad * G, 1)], axis=1)      # (rows, G+1)
    # Block-diagonal adjacency: one (TBG, TBG) tile per TB graphs.
    at = a.reshape(num_tiles, TB, G, G)
    eye = jnp.eye(TB, dtype=jnp.float32)
    adjbd = (at[:, :, :, None, :] * eye[None, :, None, :, None]
             ).reshape(num_tiles, TBG, TBG)

    kernel = partial(_graph_embed_kernel, iters=iters, tile_graphs=TB,
                     graphsize=G, embedsize=E)

    q_flat, emb_flat = pl.pallas_call(
        kernel,
        out_shape=(jax.ShapeDtypeStruct((B_pad * G, 1), jnp.float32),
                   jax.ShapeDtypeStruct((B_pad * G, E), jnp.float32)),
        grid_spec=pltpu.PrefetchScalarGridSpec(
            num_scalar_prefetch=0,
            grid=(num_tiles,),
            in_specs=[
                pl.BlockSpec((TBG, G + 1), lambda t: (t, 0)),      # weights^T + features
                pl.BlockSpec((1, TBG, TBG), lambda t: (t, 0, 0)),  # block-diag adjacency
                pl.BlockSpec((E + 8, E), lambda t: (0, 0)),        # packed params
            ],
            out_specs=[
                pl.BlockSpec((TBG, 1), lambda t: (t, 0)),          # q (per vertex)
                pl.BlockSpec((TBG, E), lambda t: (t, 0)),          # embeddings
            ],
        ),
        compiler_params=pltpu.CompilerParams(
            dimension_semantics=("parallel",),
            vmem_limit_bytes=32 * 1024 * 1024),
    )(wgt_aug, adjbd, packed)

    q = q_flat.reshape(B_pad, G)[:B]
    emb = emb_flat.reshape(B_pad, G, E)[:B]
    return q, emb


def reference_forward(features, weights, adjacency, params, iters=5):
    """Plain-JAX reference mirroring the PyTorch forward."""
    wsel, wew, wnbw, wnbp, wqall, wqact, wreduc = params
    B, G = features.shape
    E = wsel.shape[0]
    hp = jax.lax.Precision.HIGHEST
    v_selected = features[..., None] * wsel[:, 0][None, None, :]            # (B,G,E)
    w4 = jax.nn.relu(weights[..., None] * wew[:, 0][None, None, None, :])   # (B,G,G,E)
    v_weights = jnp.einsum('bge,fe->bgf', w4.sum(axis=1), wnbw, precision=hp)
    emb = jnp.zeros((B, G, E), jnp.float32)
    for _ in range(iters):
        vp = jnp.einsum('bij,bje->bie', adjacency, emb, precision=hp)
        vp = jnp.einsum('bie,fe->bif', vp, wnbp, precision=hp)
        emb = jax.nn.relu(v_selected + v_weights + vp)
    sumembed = jnp.einsum('be,fe->bf', emb.sum(axis=1), wqall, precision=hp)
    peract = jnp.einsum('bge,fe->bgf', emb, wqact, precision=hp)
    q = (jnp.einsum('be,e->b', sumembed, wreduc[0, :E], precision=hp)[:, None]
         + jnp.einsum('bge,e->bg', peract, wreduc[0, E:], precision=hp))
    return q, emb


def xavier_normal(key, shape):
    fan_out, fan_in = shape
    std = (2.0 / (fan_in + fan_out)) ** 0.5
    return std * jax.random.normal(key, shape, dtype=jnp.float32)


if __name__ == "__main__":
    # B=12, G=16 -> TB=6, TBG=96: two padding-free "parallel" grid steps.
    B, G, E, ITERS = 12, 16, 32, 5   # batch, graphsize, embedsize, iters

    key = jax.random.PRNGKey(0)
    keys = jax.random.split(key, 10)

    # Deterministic parameter init (xavier_normal, matching nn.Linear(bias=False)).
    w_selected = xavier_normal(keys[0], (E, 1))
    w_nbpriors = xavier_normal(keys[1], (E, E))
    w_nbweights = xavier_normal(keys[2], (E, E))
    w_nbweights_ew = xavier_normal(keys[3], (E, 1))
    w_q_reduc = xavier_normal(keys[4], (1, 2 * E))
    w_q_allembed = xavier_normal(keys[5], (E, E))
    w_q_action = xavier_normal(keys[6], (E, E))
    params = (w_selected, w_nbweights_ew, w_nbweights, w_nbpriors,
              w_q_allembed, w_q_action, w_q_reduc)

    # Synthetic graph batch (stands in for Solution.adjacency/weights/features).
    # TODO(synk): Solution/Problem graph extraction and train()/autograd happen
    # on the host; only the dense forward math is implemented as a kernel.
    adj_rand = (jax.random.uniform(keys[7], (B, G, G)) < 0.4).astype(jnp.float32)
    adjacency = jnp.maximum(adj_rand, jnp.swapaxes(adj_rand, 1, 2))
    adjacency = adjacency * (1.0 - jnp.eye(G, dtype=jnp.float32))
    ew = adjacency * jax.random.uniform(keys[8], (B, G, G), dtype=jnp.float32)
    weights = 0.5 * (ew + jnp.swapaxes(ew, 1, 2))
    features = (jax.random.uniform(keys[9], (B, G)) < 0.5).astype(jnp.float32)

    q_k, emb_k = graph_embedder_forward(features, weights, adjacency, params,
                                        iters=ITERS)
    q_k = jax.block_until_ready(q_k)
    emb_k = jax.block_until_ready(emb_k)

    q_r, emb_r = reference_forward(features, weights, adjacency, params, ITERS)

    assert q_k.shape == (B, G) and emb_k.shape == (B, G, E)
    assert jnp.allclose(q_k, q_r, rtol=2e-3, atol=2e-3), "q_vals mismatch"
    assert jnp.allclose(emb_k, emb_r, rtol=2e-3, atol=2e-3), "embeddings mismatch"

    print("KERNEL_OK")
</pallas_src>

<mosaic_0001>
module attributes {stable_mosaic.version = 11 : i64} {
  func.func @_graph_embed_kernel(%arg0: i32, %arg1: memref<96x17xf32, #tpu.memory_space<vmem>>, %arg2: memref<1x96x96xf32, #tpu.memory_space<vmem>>, %arg3: memref<40x32xf32, #tpu.memory_space<vmem>>, %arg4: memref<96x1xf32, #tpu.memory_space<vmem>>, %arg5: memref<96x32xf32, #tpu.memory_space<vmem>>) attributes {dimension_semantics = [#tpu.dimension_semantics<parallel>], iteration_bounds = array<i64: 2>, scalar_prefetch = 0 : i64, scratch_operands = 0 : i64, tpu.core_type = #tpu.core_type<tc>, window_params = [{transform_indices = @transform_0, window_bounds = array<i64: 96, 17>}, {transform_indices = @transform_1, window_bounds = array<i64: 1, 96, 96>}, {pipeline_mode = #tpu.pipeline_mode<synchronous>, transform_indices = @transform_2, window_bounds = array<i64: 40, 32>}, {transform_indices = @transform_3, window_bounds = array<i64: 96, 1>}, {transform_indices = @transform_4, window_bounds = array<i64: 96, 32>}]} {
    %c32 = arith.constant 32 : index
    %c0 = arith.constant 0 : index
    %0 = vector.load %arg3[%c32, %c0] : memref<40x32xf32, #tpu.memory_space<vmem>>, vector<8x32xf32>
    %1 = vector.extract_strided_slice %0 {offsets = [0, 0], sizes = [1, 32], strides = [1, 1]} : vector<8x32xf32> to vector<1x32xf32>
    %2 = vector.extract_strided_slice %0 {offsets = [1, 0], sizes = [1, 32], strides = [1, 1]} : vector<8x32xf32> to vector<1x32xf32>
    %3 = vector.extract_strided_slice %0 {offsets = [2, 0], sizes = [1, 32], strides = [1, 1]} : vector<8x32xf32> to vector<1x32xf32>
    %4 = vector.extract_strided_slice %0 {offsets = [3, 0], sizes = [1, 32], strides = [1, 1]} : vector<8x32xf32> to vector<1x32xf32>
    %5 = vector.extract_strided_slice %0 {offsets = [4, 0], sizes = [1, 32], strides = [1, 1]} : vector<8x32xf32> to vector<1x32xf32>
    %c0_0 = arith.constant 0 : index
    %c0_1 = arith.constant 0 : index
    %6 = vector.load %arg1[%c0_0, %c0_1] : memref<96x17xf32, #tpu.memory_space<vmem>>, vector<96x17xf32>
    %7 = vector.extract_strided_slice %6 {offsets = [0, 0], sizes = [96, 16], strides = [1, 1]} : vector<96x17xf32> to vector<96x16xf32>
    %8 = vector.extract_strided_slice %6 {offsets = [0, 16], sizes = [96, 1], strides = [1, 1]} : vector<96x17xf32> to vector<96x1xf32>
    %9 = vector.broadcast %8 : vector<96x1xf32> to vector<96x32xf32>
    %10 = vector.broadcast %5 : vector<1x32xf32> to vector<96x32xf32>
    %11 = arith.mulf %9, %10 : vector<96x32xf32>
    %cst = arith.constant 0.000000e+00 : f32
    %12 = vector.broadcast %cst : f32 to vector<96x16xf32>
    %13 = arith.maximumf %7, %12 : vector<96x16xf32>
    %cst_2 = arith.constant dense<0.000000e+00> : vector<96xf32>
    %14 = vector.multi_reduction <add>, %13, %cst_2 [1] : vector<96x16xf32> to vector<96xf32>
    %15 = vector.shape_cast %14 : vector<96xf32> to vector<96x1xf32>
    %cst_3 = arith.constant 0.000000e+00 : f32
    %16 = vector.broadcast %cst_3 : f32 to vector<96x16xf32>
    %17 = arith.subf %16, %7 : vector<96x16xf32>
    %cst_4 = arith.constant 0.000000e+00 : f32
    %18 = vector.broadcast %cst_4 : f32 to vector<96x16xf32>
    %19 = arith.maximumf %17, %18 : vector<96x16xf32>
    %cst_5 = arith.constant dense<0.000000e+00> : vector<96xf32>
    %20 = vector.multi_reduction <add>, %19, %cst_5 [1] : vector<96x16xf32> to vector<96xf32>
    %21 = vector.shape_cast %20 : vector<96xf32> to vector<96x1xf32>
    %22 = vector.broadcast %15 : vector<96x1xf32> to vector<96x32xf32>
    %23 = vector.broadcast %1 : vector<1x32xf32> to vector<96x32xf32>
    %24 = arith.mulf %22, %23 : vector<96x32xf32>
    %25 = arith.addf %11, %24 : vector<96x32xf32>
    %26 = vector.broadcast %21 : vector<96x1xf32> to vector<96x32xf32>
    %27 = vector.broadcast %2 : vector<1x32xf32> to vector<96x32xf32>
    %28 = arith.mulf %26, %27 : vector<96x32xf32>
    %29 = arith.addf %25, %28 : vector<96x32xf32>
    %cst_6 = arith.constant 0.000000e+00 : f32
    %30 = vector.broadcast %cst_6 : f32 to vector<96x32xf32>
    %31 = arith.maximumf %29, %30 : vector<96x32xf32>
    %c0_i32 = arith.constant 0 : i32
    %c4_i32 = arith.constant 4 : i32
    %32 = arith.addi %c0_i32, %c4_i32 : i32
    %c1_i32 = arith.constant 1 : i32
    %33 = scf.for %arg6 = %c0_i32 to %32 step %c1_i32 iter_args(%arg7 = %31) -> (vector<96x32xf32>)  : i32 {
      %c0_14 = arith.constant 0 : index
      %c0_15 = arith.constant 0 : index
      %c0_16 = arith.constant 0 : index
      %52 = vector.load %arg2[%c0_14, %c0_15, %c0_16] : memref<1x96x96xf32, #tpu.memory_space<vmem>>, vector<1x96x96xf32>
      %53 = vector.shape_cast %52 : vector<1x96x96xf32> to vector<96x96xf32>
      %c0_17 = arith.constant 0 : index
      %c0_18 = arith.constant 0 : index
      %54 = vector.load %arg3[%c0_17, %c0_18] : memref<40x32xf32, #tpu.memory_space<vmem>>, vector<32x32xf32>
      %cst_19 = arith.constant dense<0.000000e+00> : vector<96x32xf32>
      %55 = tpu.matmul %53, %arg7, %cst_19 {dimension_numbers = #tpu.dot_dimension_numbers<[1], [0], [0], [1], [0, 0, 1, 1], [], []>} : vector<96x96xf32>, vector<96x32xf32>, vector<96x32xf32> -> vector<96x32xf32>
      %cst_20 = arith.constant dense<0.000000e+00> : vector<96x32xf32>
      %56 = tpu.matmul %55, %54, %cst_20 {dimension_numbers = #tpu.dot_dimension_numbers<[1], [0], [0], [1], [0, 0, 1, 1], [], []>} : vector<96x32xf32>, vector<32x32xf32>, vector<96x32xf32> -> vector<96x32xf32>
      %57 = arith.addf %29, %56 : vector<96x32xf32>
      %cst_21 = arith.constant 0.000000e+00 : f32
      %58 = vector.broadcast %cst_21 : f32 to vector<96x32xf32>
      %59 = arith.maximumf %57, %58 : vector<96x32xf32>
      scf.yield %59 : vector<96x32xf32>
    }
    %c0_7 = arith.constant 0 : index
    %c0_8 = arith.constant 0 : index
    %34 = vector.load %arg5[%c0_7, %c0_8] : memref<96x32xf32, #tpu.memory_space<vmem>>, vector<96x32xf32>
    tpu.vector_store %arg5[%c0_7, %c0_8], %33 {strides = array<i32>} : memref<96x32xf32, #tpu.memory_space<vmem>>, vector<96x32xf32>,
    %35 = vector.shape_cast %33 : vector<96x32xf32> to vector<6x16x32xf32>
    %cst_9 = arith.constant dense<0.000000e+00> : vector<6x32xf32>
    %36 = vector.multi_reduction <add>, %35, %cst_9 [1] : vector<6x16x32xf32> to vector<6x32xf32>
    %37 = vector.shape_cast %36 : vector<6x32xf32> to vector<6x1x32xf32>
    %38 = vector.shape_cast %4 : vector<1x32xf32> to vector<1x1x32xf32>
    %39 = vector.broadcast %38 : vector<1x1x32xf32> to vector<6x16x32xf32>
    %40 = arith.mulf %35, %39 : vector<6x16x32xf32>
    %cst_10 = arith.constant dense<0.000000e+00> : vector<6x16xf32>
    %41 = vector.multi_reduction <add>, %40, %cst_10 [2] : vector<6x16x32xf32> to vector<6x16xf32>
    %42 = vector.shape_cast %41 : vector<6x16xf32> to vector<6x16x1xf32>
    %43 = vector.shape_cast %3 : vector<1x32xf32> to vector<1x1x32xf32>
    %44 = vector.broadcast %43 : vector<1x1x32xf32> to vector<6x1x32xf32>
    %45 = arith.mulf %37, %44 : vector<6x1x32xf32>
    %cst_11 = arith.constant dense<0.000000e+00> : vector<6x1xf32>
    %46 = vector.multi_reduction <add>, %45, %cst_11 [2] : vector<6x1x32xf32> to vector<6x1xf32>
    %47 = vector.shape_cast %46 : vector<6x1xf32> to vector<6x1x1xf32>
    %48 = vector.broadcast %47 : vector<6x1x1xf32> to vector<6x16x1xf32>
    %49 = arith.addf %42, %48 : vector<6x16x1xf32>
    %50 = vector.shape_cast %49 : vector<6x16x1xf32> to vector<96x1xf32>
    %c0_12 = arith.constant 0 : index
    %c0_13 = arith.constant 0 : index
    %51 = vector.load %arg4[%c0_12, %c0_13] : memref<96x1xf32, #tpu.memory_space<vmem>>, vector<96x1xf32>
    tpu.vector_store %arg4[%c0_12, %c0_13], %50 {strides = array<i32>} : memref<96x1xf32, #tpu.memory_space<vmem>>, vector<96x1xf32>,
    return
  }
  func.func @transform_0(%arg0: i32) -> (i32, i32) {
    %c0_i32 = arith.constant 0 : i32
    %c0_i32_0 = arith.constant 0 : i32
    return %arg0, %c0_i32 : i32, i32
  }
  func.func @transform_1(%arg0: i32) -> (i32, i32, i32) {
    %c0_i32 = arith.constant 0 : i32
    %c0_i32_0 = arith.constant 0 : i32
    %c0_i32_1 = arith.constant 0 : i32
    return %arg0, %c0_i32, %c0_i32_0 : i32, i32, i32
  }
  func.func @transform_2(%arg0: i32) -> (i32, i32) {
    %c0_i32 = arith.constant 0 : i32
    %c0_i32_0 = arith.constant 0 : i32
    %c0_i32_1 = arith.constant 0 : i32
    return %c0_i32, %c0_i32_0 : i32, i32
  }
  func.func @transform_3(%arg0: i32) -> (i32, i32) {
    %c0_i32 = arith.constant 0 : i32
    %c0_i32_0 = arith.constant 0 : i32
    return %arg0, %c0_i32 : i32, i32
  }
  func.func @transform_4(%arg0: i32) -> (i32, i32) {
    %c0_i32 = arith.constant 0 : i32
    %c0_i32_0 = arith.constant 0 : i32
    return %arg0, %c0_i32 : i32, i32
  }
}

</mosaic_0001>

<llo_original>
// kernel: graph_embedder_forward.1
$region0: #{graph_embedder_forward.1}
  #allocation0 [shape = 'u32[]', space=smem, size = 0x4, offset = 0x4, fixed_abs, tag = 'smem constant byte address 0x4 - core index']
  #allocation1 [shape = 'u32[144,128]{1,0:T(1,128)}', space=vmem, size = 0x12000, scoped, tag = 'internal scratch']
  %s0 = inlined_call_operand.vmem [shape: f32[192,17], index: 0, kind: input, shape index: {}]
  %s1 = inlined_call_operand.vmem [shape: f32[2,96,96], index: 1, kind: input, shape index: {}]
  %s2 = inlined_call_operand.vmem [shape: f32[40,32], index: 2, kind: input, shape index: {}]
  %s3 = inlined_call_operand.vmem [shape: f32[192,1], index: 3, kind: output, shape index: {0}]
  %s4 = inlined_call_operand.hbm [shape: f32[192,32], index: 4, kind: output, shape index: {1}]
  %5 = xla_tuple %s3, %s4
  %s6 = sld [smem:[#allocation0]]
  $region60: #{graph_embedder_forward.1} parent=0
    _
  %s8 = ssub.s32 1, %s6
  %s9 = scalar_select 0, %s8, %s6
  $region1: #{graph_embedder_forward.1} parent=0
    #allocation2 [shape = 'u8[98304]{0}', space=vmem, size = 0x18000, scoped, tag = 'output window, operand 1']
    #allocation3 [shape = 's32[2]{0}', space=sflag, size = 0x8, scoped, tag = 'scoped memory for graph_embedder_forward.1']
    %10 = vsyncpa [#allocation3], 0
    %s11 = scalar_lea.sflag [#allocation3], 1
    %12 = vsyncpa %s11, 0
    loop: start=0, step=1, limit=4
    $region2: #{graph_embedder_forward.1} parent=1 // loop_pre_header
      _
    $region3: #{graph_embedder_forward.1} parent=1 // loop_header
      %s14 = sphi 0, %s18
      %p15 = scmp.ge.s32.totalorder %s14, 4
      %s24 = sphi 0, %s26
      %s27 = sphi 0, %s24
      %s28 = sphi 0, %s27
      %s44 = sphi 0, %s28
      %s50 = sphi 0, %s52
      %s53 = sphi 0, %s50
      %s54 = sphi 0, %s53
      %s70 = sphi 0, %s54
      %s74 = sphi 0, %s74
      %s76 = sphi 0, %s74
      %s77 = sphi 0, %s76
      %s91 = sphi 0, %s77
      %s97 = sphi 0, %s99
      %s100 = sphi 0, %s97
      %s101 = sphi 0, %s100
      %s117 = sphi 0, %s101
      %s123 = sphi 0, %s125
      %s126 = sphi 0, %s123
      %s127 = sphi 0, %s126
      %s143 = sphi 0, %s127
    $region4: #{graph_embedder_forward.1} parent=1 // loop_header_branch
      %17 = sbr.rel (%p15) target = $region8
    $region5: #{graph_embedder_forward.1} parent=1 // loop_body
      %s19 = ssub.s32 %s14, 1
      %s20 = ssub.s32 %s14, 2
      %s21 = sadd.s32 %s14, 1
      %s22 = ssub.s32 %s14, %s21
      %p23 = scmp.eq.s32.totalorder %s22, 0
      %s25 = sadd.s32 %s24, 1
      %s26 = scalar_select %p23, %s24, %s25
      %p29 = pneg %p23
      %p30 = scmp.eq.s32.totalorder %s14, 1
      %p31 = por %p29, %p30
      %p32 = scmp.ne.s32.totalorder %s24, %s27
      %p33 = scmp.eq.s32.totalorder %s14, 0
      %p34 = por %p32, %p33
      %p35 = scmp.ne.s32.totalorder %s24, %s27
      %p36 = scmp.eq.s32.totalorder %s19, 1
      %p37 = por %p35, %p36
      %p38 = scmp.ne.s32.totalorder %s27, %s28
      %p39 = scmp.eq.s32.totalorder %s19, 0
      %p40 = por %p38, %p39
      %p41 = scmp.ne.s32.totalorder %s27, %s28
      %p42 = scmp.eq.s32.totalorder %s20, 1
      %p43 = por %p41, %p42
      %p45 = scmp.ne.s32.totalorder %s28, %s44
      %p46 = scmp.eq.s32.totalorder %s20, 0
      %p47 = por %p45, %p46
      %s48 = ssub.s32 %s14, %s21
      %p49 = scmp.eq.s32.totalorder %s48, 0
      %s51 = sadd.s32 %s50, 1
      %s52 = scalar_select %p49, %s50, %s51
      %p55 = pneg %p49
      %p56 = scmp.eq.s32.totalorder %s14, 1
      %p57 = por %p55, %p56
      %p58 = scmp.ne.s32.totalorder %s50, %s53
      %p59 = scmp.eq.s32.totalorder %s14, 0
      %p60 = por %p58, %p59
      %p61 = scmp.ne.s32.totalorder %s50, %s53
      %p62 = scmp.eq.s32.totalorder %s19, 1
      %p63 = por %p61, %p62
      %p64 = scmp.ne.s32.totalorder %s53, %s54
      %p65 = scmp.eq.s32.totalorder %s19, 0
      %p66 = por %p64, %p65
      %p67 = scmp.ne.s32.totalorder %s53, %s54
      %p68 = scmp.eq.s32.totalorder %s20, 1
      %p69 = por %p67, %p68
      %p71 = scmp.ne.s32.totalorder %s54, %s70
      %p72 = scmp.eq.s32.totalorder %s20, 0
      %p73 = por %p71, %p72
      %s75 = sadd.s32 %s74, 1
      %p78 = scmp.eq.s32.totalorder %s14, 1
      %p79 = scmp.ne.s32.totalorder %s74, %s76
      %p80 = scmp.eq.s32.totalorder %s14, 0
      %p81 = por %p79, %p80
      %p82 = scmp.ne.s32.totalorder %s74, %s76
      %p83 = scmp.eq.s32.totalorder %s19, 1
      %p84 = por %p82, %p83
      %p85 = scmp.ne.s32.totalorder %s76, %s77
      %p86 = scmp.eq.s32.totalorder %s19, 0
      %p87 = por %p85, %p86
      %p88 = scmp.ne.s32.totalorder %s76, %s77
      %p89 = scmp.eq.s32.totalorder %s20, 1
      %p90 = por %p88, %p89
      %p92 = scmp.ne.s32.totalorder %s77, %s91
      %p93 = scmp.eq.s32.totalorder %s20, 0
      %p94 = por %p92, %p93
      %s95 = ssub.s32 %s14, %s21
      %p96 = scmp.eq.s32.totalorder %s95, 0
      %s98 = sadd.s32 %s97, 1
      %s99 = scalar_select %p96, %s97, %s98
      %p102 = pneg %p96
      %p103 = scmp.eq.s32.totalorder %s14, 1
      %p104 = por %p102, %p103
      %p105 = scmp.ne.s32.totalorder %s97, %s100
      %p106 = scmp.eq.s32.totalorder %s14, 0
      %p107 = por %p105, %p106
      %p108 = scmp.ne.s32.totalorder %s97, %s100
      %p109 = scmp.eq.s32.totalorder %s19, 1
      %p110 = por %p108, %p109
      %p111 = scmp.ne.s32.totalorder %s100, %s101
      %p112 = scmp.eq.s32.totalorder %s19, 0
      %p113 = por %p111, %p112
      %p114 = scmp.ne.s32.totalorder %s100, %s101
      %p115 = scmp.eq.s32.totalorder %s20, 1
      %p116 = por %p114, %p115
      %p118 = scmp.ne.s32.totalorder %s101, %s117
      %p119 = scmp.eq.s32.totalorder %s20, 0
      %p120 = por %p118, %p119
      %s121 = ssub.s32 %s14, %s21
      %p122 = scmp.eq.s32.totalorder %s121, 0
      %s124 = sadd.s32 %s123, 1
      %s125 = scalar_select %p122, %s123, %s124
      %p128 = pneg %p122
      %p129 = scmp.eq.s32.totalorder %s14, 1
      %p130 = por %p128, %p129
      %p131 = scmp.ne.s32.totalorder %s123, %s126
      %p132 = scmp.eq.s32.totalorder %s14, 0
      %p133 = por %p131, %p132
      %p134 = scmp.ne.s32.totalorder %s123, %s126
      %p135 = scmp.eq.s32.totalorder %s19, 1
      %p136 = por %p134, %p135
      %p137 = scmp.ne.s32.totalorder %s126, %s127
      %p138 = scmp.eq.s32.totalorder %s19, 0
      %p139 = por %p137, %p138
      %p140 = scmp.ne.s32.totalorder %s126, %s127
      %p141 = scmp.eq.s32.totalorder %s20, 1
      %p142 = por %p140, %p141
      %p144 = scmp.ne.s32.totalorder %s127, %s143
      %p145 = scmp.eq.s32.totalorder %s20, 0
      %p146 = por %p144, %p145
      %p147 = scmp.le.s32.totalorder 1, %s14
      %p148 = scmp.lt.s32.totalorder %s14, 3
      %p149 = pnand %p147, %p148
      %p150 = pneg %p149
      // Predicated region
      $region9: #{graph_embedder_forward.1} parent=5 // pred_check
        _
      $region10: #{graph_embedder_forward.1} parent=5 // pred_check_branch
        %152 = sbr.rel (%p149) target = $region12
      $region11: #{graph_embedder_forward.1} parent=5 // pred_region
        %s153 = ssub.s32 %s14, 1
        // Predicated region
        $region13: #{graph_embedder_forward.1} parent=11 // pred_check
          %p154 = pneg %p87
        $region14: #{graph_embedder_forward.1} parent=11 // pred_check_branch
          %156 = sbr.rel (%p154) target = $region16
        $region15: #{graph_embedder_forward.1} parent=11 // pred_region
          _
        $region16: #{graph_embedder_forward.1} parent=11 // pred_fallthru
          _
      $region12: #{graph_embedder_forward.1} parent=5 // pred_fallthru
        _
      %p157 = scmp.lt.s32.totalorder %s14, 2
      // Predicated region
      $region17: #{graph_embedder_forward.1} parent=5 // pred_check
        %p158 = pneg %p157
      $region18: #{graph_embedder_forward.1} parent=5 // pred_check_branch
        %160 = sbr.rel (%p158) target = $region20
      $region19: #{graph_embedder_forward.1} parent=5 // pred_region
        // Predicated region
        $region21: #{graph_embedder_forward.1} parent=19 // pred_check
          %p161 = pneg %p34
        $region22: #{graph_embedder_forward.1} parent=19 // pred_check_branch
          %163 = sbr.rel (%p161) target = $region24
        $region23: #{graph_embedder_forward.1} parent=19 // pred_region
          %s164 = smul.u32 12, %s14
          %p165 = scmp.lt.s32.totalorder %s164, 23
          %s166 = scalar_select %p165, %s164, 23
          %s167 = smul.addr %s166, 8
          %s168 = scalar_lea.vmem %s0, %s167
          %s169 = smul.u32 12, %s14
        $region24: #{graph_embedder_forward.1} parent=19 // pred_fallthru
          _
        // Predicated region
        $region25: #{graph_embedder_forward.1} parent=19 // pred_check
          %p170 = pneg %p60
        $region26: #{graph_embedder_forward.1} parent=19 // pred_check_branch
          %172 = sbr.rel (%p170) target = $region28
        $region27: #{graph_embedder_forward.1} parent=19 // pred_region
          %p173 = scmp.lt.s32.totalorder %s14, 1
          %s174 = scalar_select %p173, %s14, 1
          %s175 = smul.addr %s174, 12
          %s176 = smul.addr %s175, 8
          %s177 = scalar_lea.vmem %s1, %s176
        $region28: #{graph_embedder_forward.1} parent=19 // pred_fallthru
          _
      $region20: #{graph_embedder_forward.1} parent=5 // pred_fallthru
        _
      %p178 = scmp.le.s32.totalorder 1, %s14
      %p179 = scmp.lt.s32.totalorder %s14, 3
      %p180 = pnand %p178, %p179
      %p181 = pneg %p180
      // Predicated region
      $region29: #{graph_embedder_forward.1} parent=5 // pred_check
        _
      $region30: #{graph_embedder_forward.1} parent=5 // pred_check_branch
        %183 = sbr.rel (%p180) target = $region32
      $region31: #{graph_embedder_forward.1} parent=5 // pred_region
        %s184 = ssub.s32 %s14, 1
        %s185 = smul.u32 12, %s19
        %p186 = scmp.lt.s32.totalorder %s185, 23
        %s187 = scalar_select %p186, %s185, 23
        %s188 = smul.addr %s187, 8
        %s189 = scalar_lea.vmem %s0, %s188
        %p190 = pneg %p40
        %p191 = pneg %p37
        %p192 = scmp.lt.s32.totalorder %s19, 1
        %s193 = scalar_select %p192, %s19, 1
        %s194 = smul.addr %s193, 12
        %s195 = smul.addr %s194, 8
        %s196 = scalar_lea.vmem %s1, %s195
        %p197 = pneg %p66
        %p198 = pneg %p63
        %p199 = pneg %p87
        %p200 = pneg %p84
        %p201 = pneg %p113
        %p202 = pneg %p110
        %s203 = smul.u32 12, %s19
        %p204 = scmp.lt.s32.totalorder %s203, 23
        %s205 = scalar_select %p204, %s203, 23
        %s206 = smul.addr %s205, 8
        %s207 = scalar_lea.vmem %s3, %s206
        %p208 = pneg %p139
        %p209 = pneg %p136
        %s210 = sand.u32 %s126, 1
        %s211 = scalar_lea.sflag [#allocation3], %s210
        %s212 = sand.u32 %s126, 1
        %s213 = smul.addr %s212, 96
        %s214 = scalar_lea.vmem [#allocation2], %s213
        %s215 = smul.u32 12, %s19
        %p216 = scmp.lt.s32.totalorder %s215, 23
        %s217 = scalar_select %p216, %s215, 23
        %s218 = smul.addr %s217, 8
        %s219 = scalar_lea.vmem %s0, %s218
        %s220 = smul.u32 12, %s19
        %p221 = scmp.lt.s32.totalorder %s19, 1
        %s222 = scalar_select %p221, %s19, 1
        %s223 = smul.addr %s222, 12
        %s224 = smul.addr %s223, 8
        %s225 = scalar_lea.vmem %s1, %s224
        %s226 = smul.u32 12, %s19
        %p227 = scmp.lt.s32.totalorder %s226, 23
        %s228 = scalar_select %p227, %s226, 23
        %s229 = smul.addr %s228, 8
        %s230 = scalar_lea.vmem %s3, %s229
        %s231 = smul.u32 12, %s19
        %s232 = smul.u32 12, %s19
        %v233 = vld [vmem:[%s2 + $0x20] sm:$0xff]
        %v234 = vld [vmem:[%s219] sm:$0xff]
        %v235 = vld [vmem:[%s219 + $0x8] sm:$0xff]
        %v236 = vld [vmem:[%s219 + $0x10] sm:$0xff]
        %v237 = vld [vmem:[%s219 + $0x18] sm:$0xff]
        %v238 = vld [vmem:[%s219 + $0x20] sm:$0xff]
        %v239 = vld [vmem:[%s219 + $0x28] sm:$0xff]
        %v240 = vld [vmem:[%s219 + $0x30] sm:$0xff]
        %v241 = vld [vmem:[%s219 + $0x38] sm:$0xff]
        %v242 = vld [vmem:[%s219 + $0x40] sm:$0xff]
        %v243 = vld [vmem:[%s219 + $0x48] sm:$0xff]
        %v244 = vld [vmem:[%s219 + $0x50] sm:$0xff]
        %v245 = vld [vmem:[%s219 + $0x58] sm:$0xff]
        %247 = vset.pattern.permute.xlu0 16
        %248 = vperm.xlu0 %247, %v234
        %v249 = vpop.permute.xlu0 %248
        %252 = vset.pattern.permute.xlu0 16
        %253 = vperm.xlu0 %252, %v235
        %v254 = vpop.permute.xlu0 %253
        %257 = vset.pattern.permute.xlu0 16
        %258 = vperm.xlu0 %257, %v236
        %v259 = vpop.permute.xlu0 %258
        %262 = vset.pattern.permute.xlu0 16
        %263 = vperm.xlu0 %262, %v237
        %v264 = vpop.permute.xlu0 %263
        %267 = vset.pattern.permute.xlu0 16
        %268 = vperm.xlu0 %267, %v238
        %v269 = vpop.permute.xlu0 %268
        %272 = vset.pattern.permute.xlu0 16
        %273 = vperm.xlu0 %272, %v239
        %v274 = vpop.permute.xlu0 %273
        %277 = vset.pattern.permute.xlu0 16
        %278 = vperm.xlu0 %277, %v240
        %v279 = vpop.permute.xlu0 %278
        %282 = vset.pattern.permute.xlu0 16
        %283 = vperm.xlu0 %282, %v241
        %v284 = vpop.permute.xlu0 %283
        %287 = vset.pattern.permute.xlu0 16
        %288 = vperm.xlu0 %287, %v242
        %v289 = vpop.permute.xlu0 %288
        %292 = vset.pattern.permute.xlu0 16
        %293 = vperm.xlu0 %292, %v243
        %v294 = vpop.permute.xlu0 %293
        %297 = vset.pattern.permute.xlu0 16
        %298 = vperm.xlu0 %297, %v244
        %v299 = vpop.permute.xlu0 %298
        %302 = vset.pattern.permute.xlu0 16
        %303 = vperm.xlu0 %302, %v245
        %v304 = vpop.permute.xlu0 %303
        %v306 = vlaneseq
        %v307 = vshrl.u32 %v306, 7
        %v308 = vsub.s32 4, %v307
        %v309 = vrot.slane %v233, %v308
        %v310 = vmul.f32 %v249, %v309
        %v311 = vmul.f32 %v254, %v309
        %v312 = vmul.f32 %v259, %v309
        %v313 = vmul.f32 %v264, %v309
        %v314 = vmul.f32 %v269, %v309
        %v315 = vmul.f32 %v274, %v309
        %v316 = vmul.f32 %v279, %v309
        %v317 = vmul.f32 %v284, %v309
        %v318 = vmul.f32 %v289, %v309
        %v319 = vmul.f32 %v294, %v309
        %v320 = vmul.f32 %v299, %v309
        %v321 = vmul.f32 %v304, %v309
        %v322 = vmax.f32 %v234, 0.0
        %v323 = vmax.f32 %v235, 0.0
        %v324 = vmax.f32 %v236, 0.0
        %v325 = vmax.f32 %v237, 0.0
        %v326 = vmax.f32 %v238, 0.0
        %v327 = vmax.f32 %v239, 0.0
        %v328 = vmax.f32 %v240, 0.0
        %v329 = vmax.f32 %v241, 0.0
        %v330 = vmax.f32 %v242, 0.0
        %v331 = vmax.f32 %v243, 0.0
        %v332 = vmax.f32 %v244, 0.0
        %v333 = vmax.f32 %v245, 0.0
        %vm334 = vcmask 130048
        %v335 = vsel %vm334, %v322, 0.0
        %336 = vadd.xlane.f32.xlu0 %v335
        %v337 = vpop.xlane.xlu0 %336
        %v338 = vsel %vm334, %v323, 0.0
        %339 = vadd.xlane.f32.xlu0 %v338
        %v340 = vpop.xlane.xlu0 %339
        %v341 = vsel %vm334, %v324, 0.0
        %342 = vadd.xlane.f32.xlu0 %v341
        %v343 = vpop.xlane.xlu0 %342
        %v344 = vsel %vm334, %v325, 0.0
        %345 = vadd.xlane.f32.xlu0 %v344
        %v346 = vpop.xlane.xlu0 %345
        %v347 = vsel %vm334, %v326, 0.0
        %348 = vadd.xlane.f32.xlu0 %v347
        %v349 = vpop.xlane.xlu0 %348
        %v350 = vsel %vm334, %v327, 0.0
        %351 = vadd.xlane.f32.xlu0 %v350
        %v352 = vpop.xlane.xlu0 %351
        %v353 = vsel %vm334, %v328, 0.0
        %354 = vadd.xlane.f32.xlu0 %v353
        %v355 = vpop.xlane.xlu0 %354
        %v356 = vsel %vm334, %v329, 0.0
        %357 = vadd.xlane.f32.xlu0 %v356
        %v358 = vpop.xlane.xlu0 %357
        %v359 = vsel %vm334, %v330, 0.0
        %360 = vadd.xlane.f32.xlu0 %v359
        %v361 = vpop.xlane.xlu0 %360
        %v362 = vsel %vm334, %v331, 0.0
        %363 = vadd.xlane.f32.xlu0 %v362
        %v364 = vpop.xlane.xlu0 %363
        %v365 = vsel %vm334, %v332, 0.0
        %366 = vadd.xlane.f32.xlu0 %v365
        %v367 = vpop.xlane.xlu0 %366
        %v368 = vsel %vm334, %v333, 0.0
        %369 = vadd.xlane.f32.xlu0 %v368
        %v370 = vpop.xlane.xlu0 %369
        %v371 = vsub.f32 0.0, %v234
        %v372 = vsub.f32 0.0, %v235
        %v373 = vsub.f32 0.0, %v236
        %v374 = vsub.f32 0.0, %v237
        %v375 = vsub.f32 0.0, %v238
        %v376 = vsub.f32 0.0, %v239
        %v377 = vsub.f32 0.0, %v240
        %v378 = vsub.f32 0.0, %v241
        %v379 = vsub.f32 0.0, %v242
        %v380 = vsub.f32 0.0, %v243
        %v381 = vsub.f32 0.0, %v244
        %v382 = vsub.f32 0.0, %v245
        %v383 = vmax.f32 %v371, 0.0
        %v384 = vmax.f32 %v372, 0.0
        %v385 = vmax.f32 %v373, 0.0
        %v386 = vmax.f32 %v374, 0.0
        %v387 = vmax.f32 %v375, 0.0
        %v388 = vmax.f32 %v376, 0.0
        %v389 = vmax.f32 %v377, 0.0
        %v390 = vmax.f32 %v378, 0.0
        %v391 = vmax.f32 %v379, 0.0
        %v392 = vmax.f32 %v380, 0.0
        %v393 = vmax.f32 %v381, 0.0
        %v394 = vmax.f32 %v382, 0.0
        %v395 = vsel %vm334, %v383, 0.0
        %396 = vadd.xlane.f32.xlu0 %v395
        %v397 = vpop.xlane.xlu0 %396
        %v398 = vsel %vm334, %v384, 0.0
        %399 = vadd.xlane.f32.xlu0 %v398
        %v400 = vpop.xlane.xlu0 %399
        %v401 = vsel %vm334, %v385, 0.0
        %402 = vadd.xlane.f32.xlu0 %v401
        %v403 = vpop.xlane.xlu0 %402
        %v404 = vsel %vm334, %v386, 0.0
        %405 = vadd.xlane.f32.xlu0 %v404
        %v406 = vpop.xlane.xlu0 %405
        %v407 = vsel %vm334, %v387, 0.0
        %408 = vadd.xlane.f32.xlu0 %v407
        %v409 = vpop.xlane.xlu0 %408
        %v410 = vsel %vm334, %v388, 0.0
        %411 = vadd.xlane.f32.xlu0 %v410
        %v412 = vpop.xlane.xlu0 %411
        %v413 = vsel %vm334, %v389, 0.0
        %414 = vadd.xlane.f32.xlu0 %v413
        %v415 = vpop.xlane.xlu0 %414
        %v416 = vsel %vm334, %v390, 0.0
        %417 = vadd.xlane.f32.xlu0 %v416
        %v418 = vpop.xlane.xlu0 %417
        %v419 = vsel %vm334, %v391, 0.0
        %420 = vadd.xlane.f32.xlu0 %v419
        %v421 = vpop.xlane.xlu0 %420
        %v422 = vsel %vm334, %v392, 0.0
        %423 = vadd.xlane.f32.xlu0 %v422
        %v424 = vpop.xlane.xlu0 %423
        %v425 = vsel %vm334, %v393, 0.0
        %426 = vadd.xlane.f32.xlu0 %v425
        %v427 = vpop.xlane.xlu0 %426
        %v428 = vsel %vm334, %v394, 0.0
        %429 = vadd.xlane.f32.xlu0 %v428
        %v430 = vpop.xlane.xlu0 %429
        %v431 = vlaneseq
        %v432 = vshrl.u32 %v431, 7
        %v433 = vsub.s32 0, %v432
        %v434 = vrot.slane %v233, %v433
        %v435 = vmul.f32 %v337, %v434
        %v436 = vmul.f32 %v340, %v434
        %v437 = vmul.f32 %v343, %v434
        %v438 = vmul.f32 %v346, %v434
        %v439 = vmul.f32 %v349, %v434
        %v440 = vmul.f32 %v352, %v434
        %v441 = vmul.f32 %v355, %v434
        %v442 = vmul.f32 %v358, %v434
        %v443 = vmul.f32 %v361, %v434
        %v444 = vmul.f32 %v364, %v434
        %v445 = vmul.f32 %v367, %v434
        %v446 = vmul.f32 %v370, %v434
        %v447 = vadd.f32 %v310, %v435
        %v448 = vadd.f32 %v311, %v436
        %v449 = vadd.f32 %v312, %v437
        %v450 = vadd.f32 %v313, %v438
        %v451 = vadd.f32 %v314, %v439
        %v452 = vadd.f32 %v315, %v440
        %v453 = vadd.f32 %v316, %v441
        %v454 = vadd.f32 %v317, %v442
        %v455 = vadd.f32 %v318, %v443
        %v456 = vadd.f32 %v319, %v444
        %v457 = vadd.f32 %v320, %v445
        %v458 = vadd.f32 %v321, %v446
        %v459 = vlaneseq
        %v460 = vshrl.u32 %v459, 7
        %v461 = vsub.s32 1, %v460
        %v462 = vrot.slane %v233, %v461
        %v463 = vmul.f32 %v397, %v462
        %v464 = vmul.f32 %v400, %v462
        %v465 = vmul.f32 %v403, %v462
        %v466 = vmul.f32 %v406, %v462
        %v467 = vmul.f32 %v409, %v462
        %v468 = vmul.f32 %v412, %v462
        %v469 = vmul.f32 %v415, %v462
        %v470 = vmul.f32 %v418, %v462
        %v471 = vmul.f32 %v421, %v462
        %v472 = vmul.f32 %v424, %v462
        %v473 = vmul.f32 %v427, %v462
        %v474 = vmul.f32 %v430, %v462
        %v475 = vadd.f32 %v447, %v463
        %v476 = vadd.f32 %v448, %v464
        %v477 = vadd.f32 %v449, %v465
        %v478 = vadd.f32 %v450, %v466
        %v479 = vadd.f32 %v451, %v467
        %v480 = vadd.f32 %v452, %v468
        %v481 = vadd.f32 %v453, %v469
        %v482 = vadd.f32 %v454, %v470
        %v483 = vadd.f32 %v455, %v471
        %v484 = vadd.f32 %v456, %v472
        %v485 = vadd.f32 %v457, %v473
        %v486 = vadd.f32 %v458, %v474
        %v487 = vmax.f32 %v475, 0.0
        %v488 = vmax.f32 %v476, 0.0
        %v489 = vmax.f32 %v477, 0.0
        %v490 = vmax.f32 %v478, 0.0
        %v491 = vmax.f32 %v479, 0.0
        %v492 = vmax.f32 %v480, 0.0
        %v493 = vmax.f32 %v481, 0.0
        %v494 = vmax.f32 %v482, 0.0
        %v495 = vmax.f32 %v483, 0.0
        %v496 = vmax.f32 %v484, 0.0
        %v497 = vmax.f32 %v485, 0.0
        %v498 = vmax.f32 %v486, 0.0
        loop: start=0, step=1, limit=4
        $region33: #{graph_embedder_forward.1} parent=31 // loop_pre_header
          _
        $region34: #{graph_embedder_forward.1} parent=31 // loop_header
          %s500 = sphi 0, %s504
          %p501 = scmp.ge.s32.totalorder %s500, 4
          %v505 = vphi %v487, %v869
          %v506 = vphi %v488, %v870
          %v507 = vphi %v489, %v871
          %v508 = vphi %v490, %v872
          %v509 = vphi %v491, %v873
          %v510 = vphi %v492, %v874
          %v511 = vphi %v493, %v875
          %v512 = vphi %v494, %v876
          %v513 = vphi %v495, %v877
          %v514 = vphi %v496, %v878
          %v515 = vphi %v497, %v879
          %v516 = vphi %v498, %v880
        $region35: #{graph_embedder_forward.1} parent=31 // loop_header_branch
          %503 = sbr.rel (%p501) target = $region39
        $region36: #{graph_embedder_forward.1} parent=31 // loop_body
          %v517 = vld [vmem:[%s225] sm:$0xff]
          %v518 = vld [vmem:[%s225 + $0x8] sm:$0xff]
          %v519 = vld [vmem:[%s225 + $0x10] sm:$0xff]
          %v520 = vld [vmem:[%s225 + $0x18] sm:$0xff]
          %v521 = vld [vmem:[%s225 + $0x20] sm:$0xff]
          %v522 = vld [vmem:[%s225 + $0x28] sm:$0xff]
          %v523 = vld [vmem:[%s225 + $0x30] sm:$0xff]
          %v524 = vld [vmem:[%s225 + $0x38] sm:$0xff]
          %v525 = vld [vmem:[%s225 + $0x40] sm:$0xff]
          %v526 = vld [vmem:[%s225 + $0x48] sm:$0xff]
          %v527 = vld [vmem:[%s225 + $0x50] sm:$0xff]
          %v528 = vld [vmem:[%s225 + $0x58] sm:$0xff]
          %v529 = vld [vmem:[%s2] sm:$0xff]
          %v530 = vld [vmem:[%s2 + $0x8] sm:$0xff]
          %v531 = vld [vmem:[%s2 + $0x10] sm:$0xff]
          %v532 = vld [vmem:[%s2 + $0x18] sm:$0xff]
          %vm533 = vcmask 785408
          %v535 = vsel %vm533, %v517, 0
          %v538 = vsel %vm533, %v518, 0
          %v541 = vsel %vm533, %v519, 0
          %v544 = vsel %vm533, %v520, 0
          %v547 = vsel %vm533, %v521, 0
          %v550 = vsel %vm533, %v522, 0
          %v553 = vsel %vm533, %v523, 0
          %v556 = vsel %vm533, %v524, 0
          %v559 = vsel %vm533, %v525, 0
          %v562 = vsel %vm533, %v526, 0
          %v565 = vsel %vm533, %v527, 0
          %v568 = vsel %vm533, %v528, 0
          %570 = vmatprep.subr.mxu0 0.0
          %571 = vmatpush1.msra.mxu0 %v505
          %572 = vmatprep.subr.mxu0 0.0
          %573 = vmatpush1.msra.mxu0 %v506
          %574 = vmatprep.subr.mxu0 0.0
          %575 = vmatpush1.msra.mxu0 %v507
          %576 = vmatprep.subr.mxu0 0.0
          %577 = vmatpush1.msra.mxu0 %v508
          %578 = vmatprep.subr.mxu0 0.0
          %579 = vmatpush1.msra.mxu0 %v509
          %580 = vmatprep.subr.mxu0 0.0
          %581 = vmatpush1.msra.mxu0 %v510
          %582 = vmatprep.subr.mxu0 0.0
          %583 = vmatpush1.msra.mxu0 %v511
          %584 = vmatprep.subr.mxu0 0.0
          %585 = vmatpush1.msra.mxu0 %v512
          %586 = vmatprep.subr.mxu0 0.0
          %587 = vmatpush1.msra.mxu0 %v513
          %588 = vmatprep.subr.mxu0 0.0
          %589 = vmatpush1.msra.mxu0 %v514
          %590 = vmatprep.subr.mxu0 0.0
          %591 = vmatpush1.msra.mxu0 %v515
          %592 = vmatprep.subr.mxu0 0.0
          %593 = vmatpush1.msra.mxu0 %v516
          %594 = vmatprep.subr.mxu0 0.0
          %595 = vmatpush1.msra.mxu0 0.0
          %596 = vmatprep.subr.mxu0 0.0
          %597 = vmatpush1.msra.mxu0 0.0
          %598 = vmatprep.subr.mxu0 0.0
          %599 = vmatpush1.msra.mxu0 0.0
          %600 = vmatprep.subr.mxu0 0.0
          %601 = vmatpush1.msra.mxu0 0.0
          %602 = vmatprep.subr.mxu0 0.0
          %603 = vmatpush1.msra.mxu0 0.0
          %604 = vmatprep.subr.mxu0 0.0
          %605 = vmatpush1.msra.mxu0 0.0
          %606 = vmatprep.subr.mxu0 0.0
          %607 = vmatpush1.msra.mxu0 0.0
          %608 = vmatprep.subr.mxu0 0.0
          %609 = vmatpush1.msra.mxu0 0.0
          %610 = vmatprep.subr.mxu0 0.0
          %611 = vmatpush1.msra.mxu0 0.0
          %612 = vmatprep.subr.mxu0 0.0
          %613 = vmatpush1.msra.mxu0 0.0
          %614 = vmatprep.subr.mxu0 0.0
          %615 = vmatpush1.msra.mxu0 0.0
          %616 = vmatprep.subr.mxu0 0.0
          %617 = vmatpush1.msra.mxu0 0.0
          %618 = vmatprep.subr.mxu0 0.0
          %619 = vmatpush1.msra.mxu0 0.0
          %620 = vmatprep.subr.mxu0 0.0
          %621 = vmatpush1.msra.mxu0 0.0
          %622 = vmatprep.subr.mxu0 0.0
          %623 = vmatpush1.msra.mxu0 0.0
          %624 = vmatprep.subr.mxu0 0.0
          %625 = vmatpush1.msra.mxu0 0.0
          %626 = vmatprep.subr.mxu0 0.0
          %627 = vmatpush1.msra.mxu0 0.0
          %628 = vmatprep.subr.mxu0 0.0
          %629 = vmatpush1.msra.mxu0 0.0
          %630 = vmatprep.subr.mxu0 0.0
          %631 = vmatpush1.msra.mxu0 0.0
          %632 = vmatprep.subr.mxu0 0.0
          %633 = vmatpush1.msra.mxu0 0.0
          %634 = vmatprep.mubr.f32.mxu0 0.0
          %635 = vmatmul.mubr.f32.gmra.mrb[0].mxu0 %v535
          %v636 = vpop.f32.mrb[0].mxu0
          %v637 = vadd.f32 0.0, %v636
          %v638 = vpop.f32.mrb[0].mxu0
          %639 = vmatprep.mubr.f32.mxu0 0.0
          %640 = vmatmul.mubr.f32.gmra.mrb[0].mxu0 %v538
          %v641 = vpop.f32.mrb[0].mxu0
          %v642 = vadd.f32 0.0, %v641
          %v643 = vpop.f32.mrb[0].mxu0
          %644 = vmatprep.mubr.f32.mxu0 0.0
          %645 = vmatmul.mubr.f32.gmra.mrb[0].mxu0 %v541
          %v646 = vpop.f32.mrb[0].mxu0
          %v647 = vadd.f32 0.0, %v646
          %v648 = vpop.f32.mrb[0].mxu0
          %649 = vmatprep.mubr.f32.mxu0 0.0
          %650 = vmatmul.mubr.f32.gmra.mrb[0].mxu0 %v544
          %v651 = vpop.f32.mrb[0].mxu0
          %v652 = vadd.f32 0.0, %v651
          %v653 = vpop.f32.mrb[0].mxu0
          %654 = vmatprep.mubr.f32.mxu0 0.0
          %655 = vmatmul.mubr.f32.gmra.mrb[0].mxu0 %v547
          %v656 = vpop.f32.mrb[0].mxu0
          %v657 = vadd.f32 0.0, %v656
          %v658 = vpop.f32.mrb[0].mxu0
          %659 = vmatprep.mubr.f32.mxu0 0.0
          %660 = vmatmul.mubr.f32.gmra.mrb[0].mxu0 %v550
          %v661 = vpop.f32.mrb[0].mxu0
          %v662 = vadd.f32 0.0, %v661
          %v663 = vpop.f32.mrb[0].mxu0
          %664 = vmatprep.mubr.f32.mxu0 0.0
          %665 = vmatmul.mubr.f32.gmra.mrb[0].mxu0 %v553
          %v666 = vpop.f32.mrb[0].mxu0
          %v667 = vadd.f32 0.0, %v666
          %v668 = vpop.f32.mrb[0].mxu0
          %669 = vmatprep.mubr.f32.mxu0 0.0
          %670 = vmatmul.mubr.f32.gmra.mrb[0].mxu0 %v556
          %v671 = vpop.f32.mrb[0].mxu0
          %v672 = vadd.f32 0.0, %v671
          %v673 = vpop.f32.mrb[0].mxu0
          %674 = vmatprep.mubr.f32.mxu0 0.0
          %675 = vmatmul.mubr.f32.gmra.mrb[0].mxu0 %v559
          %v676 = vpop.f32.mrb[0].mxu0
          %v677 = vadd.f32 0.0, %v676
          %v678 = vpop.f32.mrb[0].mxu0
          %679 = vmatprep.mubr.f32.mxu0 0.0
          %680 = vmatmul.mubr.f32.gmra.mrb[0].mxu0 %v562
          %v681 = vpop.f32.mrb[0].mxu0
          %v682 = vadd.f32 0.0, %v681
          %v683 = vpop.f32.mrb[0].mxu0
          %684 = vmatprep.mubr.f32.mxu0 0.0
          %685 = vmatmul.mubr.f32.gmra.mrb[0].mxu0 %v565
          %v686 = vpop.f32.mrb[0].mxu0
          %v687 = vadd.f32 0.0, %v686
          %v688 = vpop.f32.mrb[0].mxu0
          %689 = vmatprep.mubr.f32.mxu0 0.0
          %690 = vmatmul.mubr.f32.gmra.mrb[0].mxu0 %v568
          %v691 = vpop.f32.mrb[0].mxu0
          %v692 = vadd.f32 0.0, %v691
          %v693 = vpop.f32.mrb[0].mxu0
          %694 = vdwg.mxu0
          %vm695 = vcmask 261120
          %v697 = vsel %vm695, %v637, 0
          %v700 = vsel %vm695, %v642, 0
          %v703 = vsel %vm695, %v647, 0
          %v706 = vsel %vm695, %v652, 0
          %v709 = vsel %vm695, %v657, 0
          %v712 = vsel %vm695, %v662, 0
          %v715 = vsel %vm695, %v667, 0
          %v718 = vsel %vm695, %v672, 0
          %v721 = vsel %vm695, %v677, 0
          %v724 = vsel %vm695, %v682, 0
          %v727 = vsel %vm695, %v687, 0
          %v730 = vsel %vm695, %v692, 0
          %732 = vmatprep.subr.mxu0 0.0
          %733 = vmatpush1.msra.mxu0 %v529
          %734 = vmatprep.subr.mxu0 0.0
          %735 = vmatpush1.msra.mxu0 %v530
          %736 = vmatprep.subr.mxu0 0.0
          %737 = vmatpush1.msra.mxu0 %v531
          %738 = vmatprep.subr.mxu0 0.0
          %739 = vmatpush1.msra.mxu0 %v532
          %740 = vmatprep.subr.mxu0 0.0
          %741 = vmatpush1.msra.mxu0 0.0
          %742 = vmatprep.subr.mxu0 0.0
          %743 = vmatpush1.msra.mxu0 0.0
          %744 = vmatprep.subr.mxu0 0.0
          %745 = vmatpush1.msra.mxu0 0.0
          %746 = vmatprep.subr.mxu0 0.0
          %747 = vmatpush1.msra.mxu0 0.0
          %748 = vmatprep.subr.mxu0 0.0
          %749 = vmatpush1.msra.mxu0 0.0
          %750 = vmatprep.subr.mxu0 0.0
          %751 = vmatpush1.msra.mxu0 0.0
          %752 = vmatprep.subr.mxu0 0.0
          %753 = vmatpush1.msra.mxu0 0.0
          %754 = vmatprep.subr.mxu0 0.0
          %755 = vmatpush1.msra.mxu0 0.0
          %756 = vmatprep.subr.mxu0 0.0
          %757 = vmatpush1.msra.mxu0 0.0
          %758 = vmatprep.subr.mxu0 0.0
          %759 = vmatpush1.msra.mxu0 0.0
          %760 = vmatprep.subr.mxu0 0.0
          %761 = vmatpush1.msra.mxu0 0.0
          %762 = vmatprep.subr.mxu0 0.0
          %763 = vmatpush1.msra.mxu0 0.0
          %764 = vmatprep.subr.mxu0 0.0
          %765 = vmatpush1.msra.mxu0 0.0
          %766 = vmatprep.subr.mxu0 0.0
          %767 = vmatpush1.msra.mxu0 0.0
          %768 = vmatprep.subr.mxu0 0.0
          %769 = vmatpush1.msra.mxu0 0.0
          %770 = vmatprep.subr.mxu0 0.0
          %771 = vmatpush1.msra.mxu0 0.0
          %772 = vmatprep.subr.mxu0 0.0
          %773 = vmatpush1.msra.mxu0 0.0
          %774 = vmatprep.subr.mxu0 0.0
          %775 = vmatpush1.msra.mxu0 0.0
          %776 = vmatprep.subr.mxu0 0.0
          %777 = vmatpush1.msra.mxu0 0.0
          %778 = vmatprep.subr.mxu0 0.0
          %779 = vmatpush1.msra.mxu0 0.0
          %780 = vmatprep.subr.mxu0 0.0
          %781 = vmatpush1.msra.mxu0 0.0
          %782 = vmatprep.subr.mxu0 0.0
          %783 = vmatpush1.msra.mxu0 0.0
          %784 = vmatprep.subr.mxu0 0.0
          %785 = vmatpush1.msra.mxu0 0.0
          %786 = vmatprep.subr.mxu0 0.0
          %787 = vmatpush1.msra.mxu0 0.0
          %788 = vmatprep.subr.mxu0 0.0
          %789 = vmatpush1.msra.mxu0 0.0
          %790 = vmatprep.subr.mxu0 0.0
          %791 = vmatpush1.msra.mxu0 0.0
          %792 = vmatprep.subr.mxu0 0.0
          %793 = vmatpush1.msra.mxu0 0.0
          %794 = vmatprep.subr.mxu0 0.0
          %795 = vmatpush1.msra.mxu0 0.0
          %796 = vmatprep.mubr.f32.mxu0 0.0
          %797 = vmatmul.mubr.f32.gmra.mrb[0].mxu0 %v697
          %v798 = vpop.f32.mrb[0].mxu0
          %v799 = vadd.f32 0.0, %v798
          %v800 = vpop.f32.mrb[0].mxu0
          %801 = vmatprep.mubr.f32.mxu0 0.0
          %802 = vmatmul.mubr.f32.gmra.mrb[0].mxu0 %v700
          %v803 = vpop.f32.mrb[0].mxu0
          %v804 = vadd.f32 0.0, %v803
          %v805 = vpop.f32.mrb[0].mxu0
          %806 = vmatprep.mubr.f32.mxu0 0.0
          %807 = vmatmul.mubr.f32.gmra.mrb[0].mxu0 %v703
          %v808 = vpop.f32.mrb[0].mxu0
          %v809 = vadd.f32 0.0, %v808
          %v810 = vpop.f32.mrb[0].mxu0
          %811 = vmatprep.mubr.f32.mxu0 0.0
          %812 = vmatmul.mubr.f32.gmra.mrb[0].mxu0 %v706
          %v813 = vpop.f32.mrb[0].mxu0
          %v814 = vadd.f32 0.0, %v813
          %v815 = vpop.f32.mrb[0].mxu0
          %816 = vmatprep.mubr.f32.mxu0 0.0
          %817 = vmatmul.mubr.f32.gmra.mrb[0].mxu0 %v709
          %v818 = vpop.f32.mrb[0].mxu0
          %v819 = vadd.f32 0.0, %v818
          %v820 = vpop.f32.mrb[0].mxu0
          %821 = vmatprep.mubr.f32.mxu0 0.0
          %822 = vmatmul.mubr.f32.gmra.mrb[0].mxu0 %v712
          %v823 = vpop.f32.mrb[0].mxu0
          %v824 = vadd.f32 0.0, %v823
          %v825 = vpop.f32.mrb[0].mxu0
          %826 = vmatprep.mubr.f32.mxu0 0.0
          %827 = vmatmul.mubr.f32.gmra.mrb[0].mxu0 %v715
          %v828 = vpop.f32.mrb[0].mxu0
          %v829 = vadd.f32 0.0, %v828
          %v830 = vpop.f32.mrb[0].mxu0
          %831 = vmatprep.mubr.f32.mxu0 0.0
          %832 = vmatmul.mubr.f32.gmra.mrb[0].mxu0 %v718
          %v833 = vpop.f32.mrb[0].mxu0
          %v834 = vadd.f32 0.0, %v833
          %v835 = vpop.f32.mrb[0].mxu0
          %836 = vmatprep.mubr.f32.mxu0 0.0
          %837 = vmatmul.mubr.f32.gmra.mrb[0].mxu0 %v721
          %v838 = vpop.f32.mrb[0].mxu0
          %v839 = vadd.f32 0.0, %v838
          %v840 = vpop.f32.mrb[0].mxu0
          %841 = vmatprep.mubr.f32.mxu0 0.0
          %842 = vmatmul.mubr.f32.gmra.mrb[0].mxu0 %v724
          %v843 = vpop.f32.mrb[0].mxu0
          %v844 = vadd.f32 0.0, %v843
          %v845 = vpop.f32.mrb[0].mxu0
          %846 = vmatprep.mubr.f32.mxu0 0.0
          %847 = vmatmul.mubr.f32.gmra.mrb[0].mxu0 %v727
          %v848 = vpop.f32.mrb[0].mxu0
          %v849 = vadd.f32 0.0, %v848
          %v850 = vpop.f32.mrb[0].mxu0
          %851 = vmatprep.mubr.f32.mxu0 0.0
          %852 = vmatmul.mubr.f32.gmra.mrb[0].mxu0 %v730
          %v853 = vpop.f32.mrb[0].mxu0
          %v854 = vadd.f32 0.0, %v853
          %v855 = vpop.f32.mrb[0].mxu0
          %856 = vdwg.mxu0
          %v857 = vadd.f32 %v475, %v799
          %v858 = vadd.f32 %v476, %v804
          %v859 = vadd.f32 %v477, %v809
          %v860 = vadd.f32 %v478, %v814
          %v861 = vadd.f32 %v479, %v819
          %v862 = vadd.f32 %v480, %v824
          %v863 = vadd.f32 %v481, %v829
          %v864 = vadd.f32 %v482, %v834
          %v865 = vadd.f32 %v483, %v839
          %v866 = vadd.f32 %v484, %v844
          %v867 = vadd.f32 %v485, %v849
          %v868 = vadd.f32 %v486, %v854
          %v869 = vmax.f32 %v857, 0.0
          %v870 = vmax.f32 %v858, 0.0
          %v871 = vmax.f32 %v859, 0.0
          %v872 = vmax.f32 %v860, 0.0
          %v873 = vmax.f32 %v861, 0.0
          %v874 = vmax.f32 %v862, 0.0
          %v875 = vmax.f32 %v863, 0.0
          %v876 = vmax.f32 %v864, 0.0
          %v877 = vmax.f32 %v865, 0.0
          %v878 = vmax.f32 %v866, 0.0
          %v879 = vmax.f32 %v867, 0.0
          %v880 = vmax.f32 %v868, 0.0
        $region37: #{graph_embedder_forward.1} parent=31 // loop_footer
          %s504 = sadd.s32 1, %s500
        $region38: #{graph_embedder_forward.1} parent=31 // loop_footer_branch
          %499 = sbr.rel target = $region34
        $region39: #{graph_embedder_forward.1} parent=31 // loop_exit
          _
        %vm881 = vcmask 261120
        %882 = vst.msk [vmem:[%s214] sm:$0xff] %vm881, %v505
        %883 = vst.msk [vmem:[%s214 + $0x8] sm:$0xff] %vm881, %v506
        %884 = vst.msk [vmem:[%s214 + $0x10] sm:$0xff] %vm881, %v507
        %885 = vst.msk [vmem:[%s214 + $0x18] sm:$0xff] %vm881, %v508
        %886 = vst.msk [vmem:[%s214 + $0x20] sm:$0xff] %vm881, %v509
        %887 = vst.msk [vmem:[%s214 + $0x28] sm:$0xff] %vm881, %v510
        %888 = vst.msk [vmem:[%s214 + $0x30] sm:$0xff] %vm881, %v511
        %889 = vst.msk [vmem:[%s214 + $0x38] sm:$0xff] %vm881, %v512
        %890 = vst.msk [vmem:[%s214 + $0x40] sm:$0xff] %vm881, %v513
        %891 = vst.msk [vmem:[%s214 + $0x48] sm:$0xff] %vm881, %v514
        %892 = vst.msk [vmem:[%s214 + $0x50] sm:$0xff] %vm881, %v515
        %893 = vst.msk [vmem:[%s214 + $0x58] sm:$0xff] %vm881, %v516
        %v894 = vsel %vm881, %v505, 0.0
        %v895 = vsel %vm881, %v506, 0.0
        %v896 = vadd.f32 %v894, %v895
        %v897 = vrot.slane %v896, 4
        %v898 = vadd.f32 %v896, %v897
        %v899 = vrot.slane %v898, 2
        %v900 = vadd.f32 %v898, %v899
        %v901 = vrot.slane %v900, 1
        %v902 = vadd.f32 %v900, %v901
        %v903 = vsel %vm881, %v507, 0.0
        %v904 = vsel %vm881, %v508, 0.0
        %v905 = vadd.f32 %v903, %v904
        %v906 = vrot.slane %v905, 4
        %v907 = vadd.f32 %v905, %v906
        %v908 = vrot.slane %v907, 2
        %v909 = vadd.f32 %v907, %v908
        %v910 = vrot.slane %v909, 1
        %v911 = vadd.f32 %v909, %v910
        %v912 = vsel %vm881, %v509, 0.0
        %v913 = vsel %vm881, %v510, 0.0
        %v914 = vadd.f32 %v912, %v913
        %v915 = vrot.slane %v914, 4
        %v916 = vadd.f32 %v914, %v915
        %v917 = vrot.slane %v916, 2
        %v918 = vadd.f32 %v916, %v917
        %v919 = vrot.slane %v918, 1
        %v920 = vadd.f32 %v918, %v919
        %v921 = vsel %vm881, %v511, 0.0
        %v922 = vsel %vm881, %v512, 0.0
        %v923 = vadd.f32 %v921, %v922
        %v924 = vrot.slane %v923, 4
        %v925 = vadd.f32 %v923, %v924
        %v926 = vrot.slane %v925, 2
        %v927 = vadd.f32 %v925, %v926
        %v928 = vrot.slane %v927, 1
        %v929 = vadd.f32 %v927, %v928
        %v930 = vsel %vm881, %v513, 0.0
        %v931 = vsel %vm881, %v514, 0.0
        %v932 = vadd.f32 %v930, %v931
        %v933 = vrot.slane %v932, 4
        %v934 = vadd.f32 %v932, %v933
        %v935 = vrot.slane %v934, 2
        %v936 = vadd.f32 %v934, %v935
        %v937 = vrot.slane %v936, 1
        %v938 = vadd.f32 %v936, %v937
        %v939 = vsel %vm881, %v515, 0.0
        %v940 = vsel %vm881, %v516, 0.0
        %v941 = vadd.f32 %v939, %v940
        %v942 = vrot.slane %v941, 4
        %v943 = vadd.f32 %v941, %v942
        %v944 = vrot.slane %v943, 2
        %v945 = vadd.f32 %v943, %v944
        %v946 = vrot.slane %v945, 1
        %v947 = vadd.f32 %v945, %v946
        %v948 = vlaneseq
        %v949 = vshrl.u32 %v948, 7
        %v950 = vsub.s32 3, %v949
        %v951 = vrot.slane %v233, %v950
        %v952 = vmul.f32 %v505, %v951
        %v953 = vmul.f32 %v506, %v951
        %v954 = vmul.f32 %v507, %v951
        %v955 = vmul.f32 %v508, %v951
        %v956 = vmul.f32 %v509, %v951
        %v957 = vmul.f32 %v510, %v951
        %v958 = vmul.f32 %v511, %v951
        %v959 = vmul.f32 %v512, %v951
        %v960 = vmul.f32 %v513, %v951
        %v961 = vmul.f32 %v514, %v951
        %v962 = vmul.f32 %v515, %v951
        %v963 = vmul.f32 %v516, %v951
        %v964 = vsel %vm881, %v952, 0.0
        %965 = vadd.xlane.f32.xlu0 %v964
        %v966 = vpop.xlane.xlu0 %965
        %v967 = vsel %vm881, %v953, 0.0
        %968 = vadd.xlane.f32.xlu0 %v967
        %v969 = vpop.xlane.xlu0 %968
        %v970 = vsel %vm881, %v954, 0.0
        %971 = vadd.xlane.f32.xlu0 %v970
        %v972 = vpop.xlane.xlu0 %971
        %v973 = vsel %vm881, %v955, 0.0
        %974 = vadd.xlane.f32.xlu0 %v973
        %v975 = vpop.xlane.xlu0 %974
        %v976 = vsel %vm881, %v956, 0.0
        %977 = vadd.xlane.f32.xlu0 %v976
        %v978 = vpop.xlane.xlu0 %977
        %v979 = vsel %vm881, %v957, 0.0
        %980 = vadd.xlane.f32.xlu0 %v979
        %v981 = vpop.xlane.xlu0 %980
        %v982 = vsel %vm881, %v958, 0.0
        %983 = vadd.xlane.f32.xlu0 %v982
        %v984 = vpop.xlane.xlu0 %983
        %v985 = vsel %vm881, %v959, 0.0
        %986 = vadd.xlane.f32.xlu0 %v985
        %v987 = vpop.xlane.xlu0 %986
        %v988 = vsel %vm881, %v960, 0.0
        %989 = vadd.xlane.f32.xlu0 %v988
        %v990 = vpop.xlane.xlu0 %989
        %v991 = vsel %vm881, %v961, 0.0
        %992 = vadd.xlane.f32.xlu0 %v991
        %v993 = vpop.xlane.xlu0 %992
        %v994 = vsel %vm881, %v962, 0.0
        %995 = vadd.xlane.f32.xlu0 %v994
        %v996 = vpop.xlane.xlu0 %995
        %v997 = vsel %vm881, %v963, 0.0
        %998 = vadd.xlane.f32.xlu0 %v997
        %v999 = vpop.xlane.xlu0 %998
        %v1000 = vmul.f32 %v902, %v233
        %v1001 = vmul.f32 %v911, %v233
        %v1002 = vmul.f32 %v920, %v233
        %v1003 = vmul.f32 %v929, %v233
        %v1004 = vmul.f32 %v938, %v233
        %v1005 = vmul.f32 %v947, %v233
        %vm1006 = vcmask 256002
        %v1007 = vsel %vm1006, %v1000, 0.0
        %1008 = vadd.xlane.f32.xlu0 %v1007
        %v1009 = vpop.xlane.xlu0 %1008
        %v1010 = vsel %vm1006, %v1001, 0.0
        %1011 = vadd.xlane.f32.xlu0 %v1010
        %v1012 = vpop.xlane.xlu0 %1011
        %v1013 = vsel %vm1006, %v1002, 0.0
        %1014 = vadd.xlane.f32.xlu0 %v1013
        %v1015 = vpop.xlane.xlu0 %1014
        %v1016 = vsel %vm1006, %v1003, 0.0
        %1017 = vadd.xlane.f32.xlu0 %v1016
        %v1018 = vpop.xlane.xlu0 %1017
        %v1019 = vsel %vm1006, %v1004, 0.0
        %1020 = vadd.xlane.f32.xlu0 %v1019
        %v1021 = vpop.xlane.xlu0 %1020
        %v1022 = vsel %vm1006, %v1005, 0.0
        %1023 = vadd.xlane.f32.xlu0 %v1022
        %v1024 = vpop.xlane.xlu0 %1023
        %v1025 = vlaneseq
        %v1026 = vshrl.u32 %v1025, 7
        %v1027 = vsub.s32 2, %v1026
        %v1028 = vrot.slane %v1009, %v1027
        %v1029 = vlaneseq
        %v1030 = vshrl.u32 %v1029, 7
        %v1031 = vsub.s32 2, %v1030
        %v1032 = vrot.slane %v1012, %v1031
        %v1033 = vlaneseq
        %v1034 = vshrl.u32 %v1033, 7
        %v1035 = vsub.s32 2, %v1034
        %v1036 = vrot.slane %v1015, %v1035
        %v1037 = vlaneseq
        %v1038 = vshrl.u32 %v1037, 7
        %v1039 = vsub.s32 2, %v1038
        %v1040 = vrot.slane %v1018, %v1039
        %v1041 = vlaneseq
        %v1042 = vshrl.u32 %v1041, 7
        %v1043 = vsub.s32 2, %v1042
        %v1044 = vrot.slane %v1021, %v1043
        %v1045 = vlaneseq
        %v1046 = vshrl.u32 %v1045, 7
        %v1047 = vsub.s32 2, %v1046
        %v1048 = vrot.slane %v1024, %v1047
        %v1049 = vadd.f32 %v966, %v1028
        %v1050 = vadd.f32 %v969, %v1028
        %v1051 = vadd.f32 %v972, %v1032
        %v1052 = vadd.f32 %v975, %v1032
        %v1053 = vadd.f32 %v978, %v1036
        %v1054 = vadd.f32 %v981, %v1036
        %v1055 = vadd.f32 %v984, %v1040
        %v1056 = vadd.f32 %v987, %v1040
        %v1057 = vadd.f32 %v990, %v1044
        %v1058 = vadd.f32 %v993, %v1044
        %v1059 = vadd.f32 %v996, %v1048
        %v1060 = vadd.f32 %v999, %v1048
        %vm1061 = vcmask 7168
        %1062 = vst.msk [vmem:[%s230] sm:$0xff] %vm1061, %v1049
        %1063 = vst.msk [vmem:[%s230 + $0x8] sm:$0xff] %vm1061, %v1050
        %1064 = vst.msk [vmem:[%s230 + $0x10] sm:$0xff] %vm1061, %v1051
        %1065 = vst.msk [vmem:[%s230 + $0x18] sm:$0xff] %vm1061, %v1052
        %1066 = vst.msk [vmem:[%s230 + $0x20] sm:$0xff] %vm1061, %v1053
        %1067 = vst.msk [vmem:[%s230 + $0x28] sm:$0xff] %vm1061, %v1054
        %1068 = vst.msk [vmem:[%s230 + $0x30] sm:$0xff] %vm1061, %v1055
        %1069 = vst.msk [vmem:[%s230 + $0x38] sm:$0xff] %vm1061, %v1056
        %1070 = vst.msk [vmem:[%s230 + $0x40] sm:$0xff] %vm1061, %v1057
        %1071 = vst.msk [vmem:[%s230 + $0x48] sm:$0xff] %vm1061, %v1058
        %1072 = vst.msk [vmem:[%s230 + $0x50] sm:$0xff] %vm1061, %v1059
        %1073 = vst.msk [vmem:[%s230 + $0x58] sm:$0xff] %vm1061, %v1060
        %s1074 = smul.u32 12, %s19
        %p1075 = scmp.lt.s32.totalorder %s1074, 23
        %s1076 = scalar_select %p1075, %s1074, 23
        %s1077 = smul.addr %s1076, 8
        %s1078 = scalar_lea.vmem %s3, %s1077
        %s1079 = sand.u32 %s126, 1
        %s1080 = scalar_lea.sflag [#allocation3], %s1079
        %s1081 = sand.u32 %s126, 1
        %s1082 = smul.addr %s1081, 96
        %s1083 = scalar_lea.vmem [#allocation2], %s1082
        // Predicated region
        $region40: #{graph_embedder_forward.1} parent=31 // pred_check
          %p1084 = pneg %p110
        $region41: #{graph_embedder_forward.1} parent=31 // pred_check_branch
          %1086 = sbr.rel (%p1084) target = $region43
        $region42: #{graph_embedder_forward.1} parent=31 // pred_region
          %s1087 = smul.u32 12, %s19
        $region43: #{graph_embedder_forward.1} parent=31 // pred_fallthru
          _
        // Predicated region
        $region44: #{graph_embedder_forward.1} parent=31 // pred_check
          %p1088 = pneg %p136
        $region45: #{graph_embedder_forward.1} parent=31 // pred_check_branch
          %1090 = sbr.rel (%p1088) target = $region47
        $region46: #{graph_embedder_forward.1} parent=31 // pred_region
          %s1091 = smul.u32 12, %s19
          %s1093 = ssub.s32 1536, 1536
          %1094 = vsyncadd %s1080, %s1093
          %s1095 = smul.addr %s1091, 128
          %s1096 = scalar_lea.hbm %s4, %s1095
          %s1097 = sshll.u32 %s1083, 4
          %s1098 = int_to_ptr.vmem [resolvable:$true] %s1097
          %1103 = dma.vmem_to_hbm [thread:$0]  %s1098, 1536, %s1096, %s1080, 128, 128, 8
        $region47: #{graph_embedder_forward.1} parent=31 // pred_fallthru
          _
      $region32: #{graph_embedder_forward.1} parent=5 // pred_fallthru
        _
      %p1104 = scmp.le.s32.totalorder 2, %s14
      // Predicated region
      $region48: #{graph_embedder_forward.1} parent=5 // pred_check
        %p1105 = pneg %p1104
      $region49: #{graph_embedder_forward.1} parent=5 // pred_check_branch
        %1107 = sbr.rel (%p1105) target = $region51
      $region50: #{graph_embedder_forward.1} parent=5 // pred_region
        %s1108 = ssub.s32 %s14, 2
        // Predicated region
        $region52: #{graph_embedder_forward.1} parent=50 // pred_check
          %p1109 = pneg %p116
        $region53: #{graph_embedder_forward.1} parent=50 // pred_check_branch
          %1111 = sbr.rel (%p1109) target = $region55
        $region54: #{graph_embedder_forward.1} parent=50 // pred_region
          %s1112 = smul.u32 12, %s20
          %p1113 = scmp.lt.s32.totalorder %s1112, 23
          %s1114 = scalar_select %p1113, %s1112, 23
          %s1115 = smul.addr %s1114, 8
          %s1116 = scalar_lea.vmem %s3, %s1115
        $region55: #{graph_embedder_forward.1} parent=50 // pred_fallthru
          _
        // Predicated region
        $region56: #{graph_embedder_forward.1} parent=50 // pred_check
          %p1117 = pneg %p142
        $region57: #{graph_embedder_forward.1} parent=50 // pred_check_branch
          %1119 = sbr.rel (%p1117) target = $region59
        $region58: #{graph_embedder_forward.1} parent=50 // pred_region
          %s1120 = sand.u32 %s127, 1
          %s1121 = scalar_lea.sflag [#allocation3], %s1120
          %s1122 = sand.u32 %s127, 1
          %s1123 = smul.addr %s1122, 96
          %s1124 = scalar_lea.vmem [#allocation2], %s1123
          %1125 = dma.done %s1121, 1536
        $region59: #{graph_embedder_forward.1} parent=50 // pred_fallthru
          _
      $region51: #{graph_embedder_forward.1} parent=5 // pred_fallthru
        _
    $region6: #{graph_embedder_forward.1} parent=1 // loop_footer
      %s18 = sadd.s32 1, %s14
    $region7: #{graph_embedder_forward.1} parent=1 // loop_footer_branch
      %13 = sbr.rel target = $region3
    $region8: #{graph_embedder_forward.1} parent=1 // loop_exit
      _
    %1126 = vsyncpa [#allocation3], 1
    %s1127 = scalar_lea.sflag [#allocation3], 1
    %1128 = vsyncpa %s1127, 1

</llo_original>
